<compile_context>
chip_gen: v7x
topology: tpu7x:2x2x1
jax: 0.10.0
libtpu: 0.0.40
codegen_flags: <defaults>
</compile_context>

<pallas_src>
import jax
import jax.numpy as jnp
from jax.experimental import pallas as pl
from jax.experimental.pallas import tpu as pltpu

_COLS = 1024                 # lane-dense last dim (multiple of 128)
_DEFAULT_BLOCK_ROWS = 512    # 512 x 1024 f32 = 2 MiB per array per tile
_SMALL_FAST_PATH = 8 * 128   # below this, plain JAX beats kernel launch cost


def _mixed_rl_loss_kernel(gamma_ref, ml_ref, rl_ref, out_ref):
    # gamma lives in SMEM; mix runs on the VPU in f32.
    g = gamma_ref[0]
    ml = ml_ref[...].astype(jnp.float32)
    rl = rl_ref[...].astype(jnp.float32)
    out_ref[...] = (g * rl + (1.0 - g) * ml).astype(out_ref.dtype)


def mixed_rl_loss(ml_loss: jax.Array, rl_loss: jax.Array, gamma,
                  *, block_rows: int = _DEFAULT_BLOCK_ROWS) -> jax.Array:
    """gamma * rl_loss + (1 - gamma) * ml_loss via a tiled Pallas TPU kernel."""
    assert ml_loss.shape == rl_loss.shape, "ml_loss / rl_loss shapes must match"
    orig_shape = ml_loss.shape

    gamma_arr = jnp.asarray(gamma, dtype=jnp.float32).reshape(1)

    # Fast path: scalar / tiny losses -> plain fused XLA elementwise.
    n = int(ml_loss.size) if ml_loss.ndim > 0 else 1
    if n < _SMALL_FAST_PATH:
        g = gamma_arr[0].astype(ml_loss.dtype) if ml_loss.dtype != jnp.float32 else gamma_arr[0]
        return (g * rl_loss + (1.0 - g) * ml_loss).astype(ml_loss.dtype)

    # Lane-dense layout: flatten, pad to a multiple of COLS, view as (rows, COLS).
    flat_ml = ml_loss.reshape(-1)
    flat_rl = rl_loss.reshape(-1)
    padded = pl.cdiv(n, _COLS) * _COLS
    if padded != n:
        flat_ml = jnp.pad(flat_ml, (0, padded - n))
        flat_rl = jnp.pad(flat_rl, (0, padded - n))
    rows = padded // _COLS
    ml2 = flat_ml.reshape(rows, _COLS)
    rl2 = flat_rl.reshape(rows, _COLS)

    # Tile row axis. tr is either a multiple of 8 or the full row extent.
    tr = min(block_rows, rows)
    grid = (pl.cdiv(rows, tr),)

    out2 = pl.pallas_call(
        _mixed_rl_loss_kernel,
        out_shape=jax.ShapeDtypeStruct((rows, _COLS), ml2.dtype),
        grid=grid,
        in_specs=[
            pl.BlockSpec(memory_space=pltpu.MemorySpace.SMEM),   # gamma scalar
            pl.BlockSpec((tr, _COLS), lambda i: (i, 0)),
            pl.BlockSpec((tr, _COLS), lambda i: (i, 0)),
        ],
        out_specs=pl.BlockSpec((tr, _COLS), lambda i: (i, 0)),
        compiler_params=pltpu.CompilerParams(
            dimension_semantics=("parallel",),      # megacore-shardable on v7x
            vmem_limit_bytes=32 * 1024 * 1024,      # explicit; tile uses ~12 MiB
        ),
    )(gamma_arr, ml2, rl2)

    return out2.reshape(-1)[:n].reshape(orig_shape)


if __name__ == "__main__":
    gamma = 0.9984  # typical mixed ML/RL objective weighting

    key = jax.random.PRNGKey(0)
    k0, k1, k2, k3, k4, k5 = jax.random.split(key, 6)

    # 1) Small per-(batch, seq) losses: batch=2, seq=8 (fast path).
    batch, seq = 2, 8
    ml_small = jax.random.uniform(k0, (batch, seq), dtype=jnp.float32) * 5.0
    rl_small = jax.random.uniform(k1, (batch, seq), dtype=jnp.float32) * 5.0
    out_small = jax.block_until_ready(mixed_rl_loss(ml_small, rl_small, gamma))
    ref_small = gamma * rl_small + (1.0 - gamma) * ml_small
    assert out_small.shape == ml_small.shape
    assert jnp.allclose(out_small, ref_small, atol=1e-6, rtol=1e-6), "small mismatch"

    # 2) Scalar losses (common PyTorch usage).
    ml_s = jnp.float32(2.5)
    rl_s = jnp.float32(0.75)
    out_s = jax.block_until_ready(mixed_rl_loss(ml_s, rl_s, gamma))
    ref_s = gamma * rl_s + (1.0 - gamma) * ml_s
    assert jnp.allclose(out_s, ref_s, atol=1e-6, rtol=1e-6), "scalar mismatch"

    # 3) Larger per-token losses -> exercises the tiled Pallas kernel path
    #    (block_rows=8 forces a multi-step grid even at this modest size).
    b2, s2 = 4, 8192
    ml_big = jax.random.uniform(k2, (b2, s2), dtype=jnp.float32) * 5.0
    rl_big = jax.random.uniform(k3, (b2, s2), dtype=jnp.float32) * 5.0
    out_big = jax.block_until_ready(mixed_rl_loss(ml_big, rl_big, gamma, block_rows=8))
    ref_big = gamma * rl_big + (1.0 - gamma) * ml_big
    assert out_big.shape == ml_big.shape
    assert jnp.allclose(out_big, ref_big, atol=1e-6, rtol=1e-6), "big mismatch"

    # 4) Ragged tail (total elements not a multiple of 1024) through the kernel.
    b3, s3 = 3, 1000
    ml_rag = jax.random.uniform(k4, (b3, s3), dtype=jnp.float32) * 5.0
    rl_rag = jax.random.uniform(k5, (b3, s3), dtype=jnp.float32) * 5.0
    out_rag = jax.block_until_ready(mixed_rl_loss(ml_rag, rl_rag, gamma))
    ref_rag = gamma * rl_rag + (1.0 - gamma) * ml_rag
    assert out_rag.shape == ml_rag.shape
    assert jnp.allclose(out_rag, ref_rag, atol=1e-6, rtol=1e-6), "ragged mismatch"

    print("KERNEL_OK")
</pallas_src>

<mosaic_0001>
module attributes {stable_mosaic.version = 11 : i64} {
  func.func @_mixed_rl_loss_kernel(%arg0: i32, %arg1: memref<1xf32, #tpu.memory_space<smem>>, %arg2: memref<8x1024xf32, #tpu.memory_space<vmem>>, %arg3: memref<8x1024xf32, #tpu.memory_space<vmem>>, %arg4: memref<8x1024xf32, #tpu.memory_space<vmem>>) attributes {dimension_semantics = [#tpu.dimension_semantics<parallel>], iteration_bounds = array<i64: 4>, scalar_prefetch = 0 : i64, scratch_operands = 0 : i64, tpu.core_type = #tpu.core_type<tc>, window_params = [{transform_indices = @transform_0, window_bounds = array<i64: 1>}, {transform_indices = @transform_1, window_bounds = array<i64: 8, 1024>}, {transform_indices = @transform_2, window_bounds = array<i64: 8, 1024>}, {transform_indices = @transform_3, window_bounds = array<i64: 8, 1024>}]} {
    %c0 = arith.constant 0 : index
    %0 = memref.load %arg1[%c0] : memref<1xf32, #tpu.memory_space<smem>>
    %c0_0 = arith.constant 0 : index
    %c0_1 = arith.constant 0 : index
    %1 = vector.load %arg2[%c0_0, %c0_1] : memref<8x1024xf32, #tpu.memory_space<vmem>>, vector<8x1024xf32>
    %c0_2 = arith.constant 0 : index
    %c0_3 = arith.constant 0 : index
    %2 = vector.load %arg3[%c0_2, %c0_3] : memref<8x1024xf32, #tpu.memory_space<vmem>>, vector<8x1024xf32>
    %3 = vector.broadcast %0 : f32 to vector<8x1024xf32>
    %4 = arith.mulf %3, %2 : vector<8x1024xf32>
    %cst = arith.constant 1.000000e+00 : f32
    %5 = arith.subf %cst, %0 : f32
    %6 = vector.broadcast %5 : f32 to vector<8x1024xf32>
    %7 = arith.mulf %6, %1 : vector<8x1024xf32>
    %8 = arith.addf %4, %7 : vector<8x1024xf32>
    %c0_4 = arith.constant 0 : index
    %c0_5 = arith.constant 0 : index
    %9 = vector.load %arg4[%c0_4, %c0_5] : memref<8x1024xf32, #tpu.memory_space<vmem>>, vector<8x1024xf32>
    tpu.vector_store %arg4[%c0_4, %c0_5], %8 {strides = array<i32>} : memref<8x1024xf32, #tpu.memory_space<vmem>>, vector<8x1024xf32>,
    return
  }
  func.func @transform_0(%arg0: i32) -> i32 {
    %c0_i32 = arith.constant 0 : i32
    %c0_i32_0 = arith.constant 0 : i32
    return %c0_i32 : i32
  }
  func.func @transform_1(%arg0: i32) -> (i32, i32) {
    %c0_i32 = arith.constant 0 : i32
    %c0_i32_0 = arith.constant 0 : i32
    return %arg0, %c0_i32 : i32, i32
  }
  func.func @transform_2(%arg0: i32) -> (i32, i32) {
    %c0_i32 = arith.constant 0 : i32
    %c0_i32_0 = arith.constant 0 : i32
    return %arg0, %c0_i32 : i32, i32
  }
  func.func @transform_3(%arg0: i32) -> (i32, i32) {
    %c0_i32 = arith.constant 0 : i32
    %c0_i32_0 = arith.constant 0 : i32
    return %arg0, %c0_i32 : i32, i32
  }
}

</mosaic_0001>

<llo_original>
// kernel: tpu_custom_call.1
$region0: #{tpu_custom_call.1}
  #allocation0 [shape = 'u32[]', space=smem, size = 0x4, offset = 0x4, fixed_abs, tag = 'smem constant byte address 0x4 - core index']
  #allocation1 [shape = 'u32[144,128]{1,0:T(1,128)}', space=vmem, size = 0x12000, scoped, tag = 'internal scratch']
  #allocation2 [shape = 'f32[1]{0:T(128)S(6)}', space=smem, size = 0x200, scoped, tag = 'scoped memory for tpu_custom_call.1']
  %s0 = inlined_call_operand.<no memory space> [shape: f32[1], index: 0, kind: input, shape index: {}]
  %s1 = inlined_call_operand.hbm [shape: f32[32,1024], index: 1, kind: input, shape index: {}]
  %s2 = inlined_call_operand.hbm [shape: f32[32,1024], index: 2, kind: input, shape index: {}]
  %s3 = inlined_call_operand.hbm [shape: f32[32,1024], index: 3, kind: output, shape index: {}]
  %s4 = sld [smem:[#allocation0]]
  $region53: #{tpu_custom_call.1} parent=0
    _
  %s6 = ssub.s32 1, %s4
  %s7 = scalar_select 0, %s6, %s4
  %8 = sst [smem:[#allocation2]] %s0
  $region1: #{tpu_custom_call.1} parent=0
    #allocation3 [shape = 'u8[65536]{0}', space=vmem, size = 0x10000, scoped, tag = 'input window, operand 1']
    #allocation4 [shape = 's32[2]{0}', space=sflag, size = 0x8, scoped, tag = 'scoped memory for tpu_custom_call.1']
    #allocation5 [shape = 's32[2]{0}', space=sflag, size = 0x8, scoped, tag = 'scoped memory for tpu_custom_call.1']
    #allocation6 [shape = 'u8[65536]{0}', space=vmem, size = 0x10000, scoped, tag = 'input window, operand 2']
    #allocation7 [shape = 's32[2]{0}', space=sflag, size = 0x8, scoped, tag = 'scoped memory for tpu_custom_call.1']
    #allocation8 [shape = 'u8[65536]{0}', space=vmem, size = 0x10000, scoped, tag = 'output window, operand 0']
    %9 = vsyncpa [#allocation4], 0
    %s10 = scalar_lea.sflag [#allocation4], 1
    %11 = vsyncpa %s10, 0
    %12 = vsyncpa [#allocation7], 0
    %s13 = scalar_lea.sflag [#allocation7], 1
    %14 = vsyncpa %s13, 0
    %15 = vsyncpa [#allocation5], 0
    %s16 = scalar_lea.sflag [#allocation5], 1
    %17 = vsyncpa %s16, 0
    loop: start=0, step=1, limit=6
    $region2: #{tpu_custom_call.1} parent=1 // loop_pre_header
      _
    $region3: #{tpu_custom_call.1} parent=1 // loop_header
      %s19 = sphi 0, %s23
      %p20 = scmp.ge.s32.totalorder %s19, 6
      %s27 = sphi 0, %s27
      %s29 = sphi 0, %s27
      %s30 = sphi 0, %s29
      %s44 = sphi 0, %s30
      %s50 = sphi 0, %s52
      %s53 = sphi 0, %s50
      %s54 = sphi 0, %s53
      %s70 = sphi 0, %s54
      %s76 = sphi 0, %s78
      %s79 = sphi 0, %s76
      %s80 = sphi 0, %s79
      %s96 = sphi 0, %s80
      %s102 = sphi 0, %s104
      %s105 = sphi 0, %s102
      %s106 = sphi 0, %s105
      %s122 = sphi 0, %s106
    $region4: #{tpu_custom_call.1} parent=1 // loop_header_branch
      %22 = sbr.rel (%p20) target = $region8
    $region5: #{tpu_custom_call.1} parent=1 // loop_body
      %s24 = ssub.s32 %s19, 1
      %s25 = ssub.s32 %s19, 2
      %s26 = sadd.s32 %s19, 1
      %s28 = sadd.s32 %s27, 1
      %p31 = scmp.eq.s32.totalorder %s19, 3
      %p32 = scmp.ne.s32.totalorder %s27, %s29
      %p33 = scmp.eq.s32.totalorder %s19, 0
      %p34 = por %p32, %p33
      %p35 = scmp.ne.s32.totalorder %s27, %s29
      %p36 = scmp.eq.s32.totalorder %s24, 3
      %p37 = por %p35, %p36
      %p38 = scmp.ne.s32.totalorder %s29, %s30
      %p39 = scmp.eq.s32.totalorder %s24, 0
      %p40 = por %p38, %p39
      %p41 = scmp.ne.s32.totalorder %s29, %s30
      %p42 = scmp.eq.s32.totalorder %s25, 3
      %p43 = por %p41, %p42
      %p45 = scmp.ne.s32.totalorder %s30, %s44
      %p46 = scmp.eq.s32.totalorder %s25, 0
      %p47 = por %p45, %p46
      %s48 = ssub.s32 %s19, %s26
      %p49 = scmp.eq.s32.totalorder %s48, 0
      %s51 = sadd.s32 %s50, 1
      %s52 = scalar_select %p49, %s50, %s51
      %p55 = pneg %p49
      %p56 = scmp.eq.s32.totalorder %s19, 3
      %p57 = por %p55, %p56
      %p58 = scmp.ne.s32.totalorder %s50, %s53
      %p59 = scmp.eq.s32.totalorder %s19, 0
      %p60 = por %p58, %p59
      %p61 = scmp.ne.s32.totalorder %s50, %s53
      %p62 = scmp.eq.s32.totalorder %s24, 3
      %p63 = por %p61, %p62
      %p64 = scmp.ne.s32.totalorder %s53, %s54
      %p65 = scmp.eq.s32.totalorder %s24, 0
      %p66 = por %p64, %p65
      %p67 = scmp.ne.s32.totalorder %s53, %s54
      %p68 = scmp.eq.s32.totalorder %s25, 3
      %p69 = por %p67, %p68
      %p71 = scmp.ne.s32.totalorder %s54, %s70
      %p72 = scmp.eq.s32.totalorder %s25, 0
      %p73 = por %p71, %p72
      %s74 = ssub.s32 %s19, %s26
      %p75 = scmp.eq.s32.totalorder %s74, 0
      %s77 = sadd.s32 %s76, 1
      %s78 = scalar_select %p75, %s76, %s77
      %p81 = pneg %p75
      %p82 = scmp.eq.s32.totalorder %s19, 3
      %p83 = por %p81, %p82
      %p84 = scmp.ne.s32.totalorder %s76, %s79
      %p85 = scmp.eq.s32.totalorder %s19, 0
      %p86 = por %p84, %p85
      %p87 = scmp.ne.s32.totalorder %s76, %s79
      %p88 = scmp.eq.s32.totalorder %s24, 3
      %p89 = por %p87, %p88
      %p90 = scmp.ne.s32.totalorder %s79, %s80
      %p91 = scmp.eq.s32.totalorder %s24, 0
      %p92 = por %p90, %p91
      %p93 = scmp.ne.s32.totalorder %s79, %s80
      %p94 = scmp.eq.s32.totalorder %s25, 3
      %p95 = por %p93, %p94
      %p97 = scmp.ne.s32.totalorder %s80, %s96
      %p98 = scmp.eq.s32.totalorder %s25, 0
      %p99 = por %p97, %p98
      %s100 = ssub.s32 %s19, %s26
      %p101 = scmp.eq.s32.totalorder %s100, 0
      %s103 = sadd.s32 %s102, 1
      %s104 = scalar_select %p101, %s102, %s103
      %p107 = pneg %p101
      %p108 = scmp.eq.s32.totalorder %s19, 3
      %p109 = por %p107, %p108
      %p110 = scmp.ne.s32.totalorder %s102, %s105
      %p111 = scmp.eq.s32.totalorder %s19, 0
      %p112 = por %p110, %p111
      %p113 = scmp.ne.s32.totalorder %s102, %s105
      %p114 = scmp.eq.s32.totalorder %s24, 3
      %p115 = por %p113, %p114
      %p116 = scmp.ne.s32.totalorder %s105, %s106
      %p117 = scmp.eq.s32.totalorder %s24, 0
      %p118 = por %p116, %p117
      %p119 = scmp.ne.s32.totalorder %s105, %s106
      %p120 = scmp.eq.s32.totalorder %s25, 3
      %p121 = por %p119, %p120
      %p123 = scmp.ne.s32.totalorder %s106, %s122
      %p124 = scmp.eq.s32.totalorder %s25, 0
      %p125 = por %p123, %p124
      %p126 = scmp.le.s32.totalorder 1, %s19
      %p127 = scmp.lt.s32.totalorder %s19, 5
      %p128 = pnand %p126, %p127
      %p129 = pneg %p128
      // Predicated region
      $region9: #{tpu_custom_call.1} parent=5 // pred_check
        _
      $region10: #{tpu_custom_call.1} parent=5 // pred_check_branch
        %131 = sbr.rel (%p128) target = $region12
      $region11: #{tpu_custom_call.1} parent=5 // pred_region
        %s132 = ssub.s32 %s19, 1
        // Predicated region
        $region13: #{tpu_custom_call.1} parent=11 // pred_check
          %p133 = pneg %p40
        $region14: #{tpu_custom_call.1} parent=11 // pred_check_branch
          %135 = sbr.rel (%p133) target = $region16
        $region15: #{tpu_custom_call.1} parent=11 // pred_region
          _
        $region16: #{tpu_custom_call.1} parent=11 // pred_fallthru
          _
      $region12: #{tpu_custom_call.1} parent=5 // pred_fallthru
        _
      %p136 = scmp.lt.s32.totalorder %s19, 4
      // Predicated region
      $region17: #{tpu_custom_call.1} parent=5 // pred_check
        %p137 = pneg %p136
      $region18: #{tpu_custom_call.1} parent=5 // pred_check_branch
        %139 = sbr.rel (%p137) target = $region20
      $region19: #{tpu_custom_call.1} parent=5 // pred_region
        // Predicated region
        $region21: #{tpu_custom_call.1} parent=19 // pred_check
          %p140 = pneg %p60
        $region22: #{tpu_custom_call.1} parent=19 // pred_check_branch
          %142 = sbr.rel (%p140) target = $region24
        $region23: #{tpu_custom_call.1} parent=19 // pred_region
          %s143 = sand.u32 %s50, 1
          %s144 = scalar_lea.sflag [#allocation4], %s143
          %s145 = sand.u32 %s50, 1
          %s146 = smul.addr %s145, 64
          %s147 = scalar_lea.vmem [#allocation3], %s146
          %s149 = ssub.s32 1024, 1024
          %150 = vsyncadd %s144, %s149
          %s151 = smul.addr %s19, 8
          %s152 = smul.addr %s151, 128
          %s153 = scalar_lea.hbm %s1, %s152
          %s155 = sshll.u32 %s147, 4
          %s156 = int_to_ptr.vmem [resolvable:$true] %s155
          %158 = dma.hbm_to_vmem [thread:$0]  %s153, 1024, %s156, %s144
        $region24: #{tpu_custom_call.1} parent=19 // pred_fallthru
          _
        // Predicated region
        $region25: #{tpu_custom_call.1} parent=19 // pred_check
          %p159 = pneg %p86
        $region26: #{tpu_custom_call.1} parent=19 // pred_check_branch
          %161 = sbr.rel (%p159) target = $region28
        $region27: #{tpu_custom_call.1} parent=19 // pred_region
          %s162 = sand.u32 %s76, 1
          %s163 = scalar_lea.sflag [#allocation7], %s162
          %s164 = sand.u32 %s76, 1
          %s165 = smul.addr %s164, 64
          %s166 = scalar_lea.vmem [#allocation6], %s165
          %s168 = ssub.s32 1024, 1024
          %169 = vsyncadd %s163, %s168
          %s170 = smul.addr %s19, 8
          %s171 = smul.addr %s170, 128
          %s172 = scalar_lea.hbm %s2, %s171
          %s174 = sshll.u32 %s166, 4
          %s175 = int_to_ptr.vmem [resolvable:$true] %s174
          %177 = dma.hbm_to_vmem [thread:$0]  %s172, 1024, %s175, %s163
        $region28: #{tpu_custom_call.1} parent=19 // pred_fallthru
          _
      $region20: #{tpu_custom_call.1} parent=5 // pred_fallthru
        _
      %p178 = scmp.le.s32.totalorder 1, %s19
      %p179 = scmp.lt.s32.totalorder %s19, 5
      %p180 = pnand %p178, %p179
      %p181 = pneg %p180
      // Predicated region
      $region29: #{tpu_custom_call.1} parent=5 // pred_check
        _
      $region30: #{tpu_custom_call.1} parent=5 // pred_check_branch
        %183 = sbr.rel (%p180) target = $region32
      $region31: #{tpu_custom_call.1} parent=5 // pred_region
        %s184 = ssub.s32 %s19, 1
        %s185 = sand.u32 %s53, 1
        %s186 = scalar_lea.sflag [#allocation4], %s185
        %s187 = sand.u32 %s53, 1
        %s188 = smul.addr %s187, 64
        %s189 = scalar_lea.vmem [#allocation3], %s188
        // Predicated region
        $region33: #{tpu_custom_call.1} parent=31 // pred_check
          %p190 = pneg %p66
        $region34: #{tpu_custom_call.1} parent=31 // pred_check_branch
          %192 = sbr.rel (%p190) target = $region36
        $region35: #{tpu_custom_call.1} parent=31 // pred_region
          %193 = dma.done %s186, 1024
        $region36: #{tpu_custom_call.1} parent=31 // pred_fallthru
          _
        %s194 = sand.u32 %s79, 1
        %s195 = scalar_lea.sflag [#allocation7], %s194
        %s196 = sand.u32 %s79, 1
        %s197 = smul.addr %s196, 64
        %s198 = scalar_lea.vmem [#allocation6], %s197
        // Predicated region
        $region37: #{tpu_custom_call.1} parent=31 // pred_check
          %p199 = pneg %p92
        $region38: #{tpu_custom_call.1} parent=31 // pred_check_branch
          %201 = sbr.rel (%p199) target = $region40
        $region39: #{tpu_custom_call.1} parent=31 // pred_region
          %202 = dma.done %s195, 1024
        $region40: #{tpu_custom_call.1} parent=31 // pred_fallthru
          _
        %p203 = pneg %p40
        %p204 = pneg %p37
        %s205 = sand.u32 %s53, 1
        %s206 = scalar_lea.sflag [#allocation4], %s205
        %s207 = sand.u32 %s53, 1
        %s208 = smul.addr %s207, 64
        %s209 = scalar_lea.vmem [#allocation3], %s208
        %p210 = pneg %p66
        %p211 = pneg %p63
        %s212 = sand.u32 %s79, 1
        %s213 = scalar_lea.sflag [#allocation7], %s212
        %s214 = sand.u32 %s79, 1
        %s215 = smul.addr %s214, 64
        %s216 = scalar_lea.vmem [#allocation6], %s215
        %p217 = pneg %p92
        %p218 = pneg %p89
        %p219 = pneg %p118
        %p220 = pneg %p115
        %s221 = sand.u32 %s105, 1
        %s222 = scalar_lea.sflag [#allocation5], %s221
        %s223 = sand.u32 %s105, 1
        %s224 = smul.addr %s223, 64
        %s225 = scalar_lea.vmem [#allocation8], %s224
        %s226 = sld [smem:[#allocation2]]
        %v227 = vld [vmem:[%s189] sm:$0xff]
        %v228 = vld [vmem:[%s189 + $0x8] sm:$0xff]
        %v229 = vld [vmem:[%s189 + $0x10] sm:$0xff]
        %v230 = vld [vmem:[%s189 + $0x18] sm:$0xff]
        %v231 = vld [vmem:[%s189 + $0x20] sm:$0xff]
        %v232 = vld [vmem:[%s189 + $0x28] sm:$0xff]
        %v233 = vld [vmem:[%s189 + $0x30] sm:$0xff]
        %v234 = vld [vmem:[%s189 + $0x38] sm:$0xff]
        %v235 = vld [vmem:[%s198] sm:$0xff]
        %v236 = vld [vmem:[%s198 + $0x8] sm:$0xff]
        %v237 = vld [vmem:[%s198 + $0x10] sm:$0xff]
        %v238 = vld [vmem:[%s198 + $0x18] sm:$0xff]
        %v239 = vld [vmem:[%s198 + $0x20] sm:$0xff]
        %v240 = vld [vmem:[%s198 + $0x28] sm:$0xff]
        %v241 = vld [vmem:[%s198 + $0x30] sm:$0xff]
        %v242 = vld [vmem:[%s198 + $0x38] sm:$0xff]
        %v243 = vstv %s226
        %v244 = vmul.f32 %v243, %v235
        %v245 = vmul.f32 %v243, %v236
        %v246 = vmul.f32 %v243, %v237
        %v247 = vmul.f32 %v243, %v238
        %v248 = vmul.f32 %v243, %v239
        %v249 = vmul.f32 %v243, %v240
        %v250 = vmul.f32 %v243, %v241
        %v251 = vmul.f32 %v243, %v242
        %s252 = ssub.f32 1.0, %s226
        %v253 = vstv %s252
        %v254 = vmul.f32 %v253, %v227
        %v255 = vmul.f32 %v253, %v228
        %v256 = vmul.f32 %v253, %v229
        %v257 = vmul.f32 %v253, %v230
        %v258 = vmul.f32 %v253, %v231
        %v259 = vmul.f32 %v253, %v232
        %v260 = vmul.f32 %v253, %v233
        %v261 = vmul.f32 %v253, %v234
        %v262 = vadd.f32 %v244, %v254
        %v263 = vadd.f32 %v245, %v255
        %v264 = vadd.f32 %v246, %v256
        %v265 = vadd.f32 %v247, %v257
        %v266 = vadd.f32 %v248, %v258
        %v267 = vadd.f32 %v249, %v259
        %v268 = vadd.f32 %v250, %v260
        %v269 = vadd.f32 %v251, %v261
        %270 = vst [vmem:[%s225] sm:$0xff] %v262
        %271 = vst [vmem:[%s225 + $0x8] sm:$0xff] %v263
        %272 = vst [vmem:[%s225 + $0x10] sm:$0xff] %v264
        %273 = vst [vmem:[%s225 + $0x18] sm:$0xff] %v265
        %274 = vst [vmem:[%s225 + $0x20] sm:$0xff] %v266
        %275 = vst [vmem:[%s225 + $0x28] sm:$0xff] %v267
        %276 = vst [vmem:[%s225 + $0x30] sm:$0xff] %v268
        %277 = vst [vmem:[%s225 + $0x38] sm:$0xff] %v269
        %s278 = sand.u32 %s105, 1
        %s279 = scalar_lea.sflag [#allocation5], %s278
        %s280 = sand.u32 %s105, 1
        %s281 = smul.addr %s280, 64
        %s282 = scalar_lea.vmem [#allocation8], %s281
        // Predicated region
        $region41: #{tpu_custom_call.1} parent=31 // pred_check
          %p283 = pneg %p115
        $region42: #{tpu_custom_call.1} parent=31 // pred_check_branch
          %285 = sbr.rel (%p283) target = $region44
        $region43: #{tpu_custom_call.1} parent=31 // pred_region
          %s287 = ssub.s32 1024, 1024
          %288 = vsyncadd %s279, %s287
          %s289 = smul.addr %s24, 8
          %s290 = smul.addr %s289, 128
          %s291 = scalar_lea.hbm %s3, %s290
          %s293 = sshll.u32 %s282, 4
          %s294 = int_to_ptr.vmem [resolvable:$true] %s293
          %296 = dma.vmem_to_hbm [thread:$0]  %s294, 1024, %s291, %s279
        $region44: #{tpu_custom_call.1} parent=31 // pred_fallthru
          _
      $region32: #{tpu_custom_call.1} parent=5 // pred_fallthru
        _
      %p297 = scmp.le.s32.totalorder 2, %s19
      // Predicated region
      $region45: #{tpu_custom_call.1} parent=5 // pred_check
        %p298 = pneg %p297
      $region46: #{tpu_custom_call.1} parent=5 // pred_check_branch
        %300 = sbr.rel (%p298) target = $region48
      $region47: #{tpu_custom_call.1} parent=5 // pred_region
        %s301 = ssub.s32 %s19, 2
        // Predicated region
        $region49: #{tpu_custom_call.1} parent=47 // pred_check
          %p302 = pneg %p121
        $region50: #{tpu_custom_call.1} parent=47 // pred_check_branch
          %304 = sbr.rel (%p302) target = $region52
        $region51: #{tpu_custom_call.1} parent=47 // pred_region
          %s305 = sand.u32 %s106, 1
          %s306 = scalar_lea.sflag [#allocation5], %s305
          %s307 = sand.u32 %s106, 1
          %s308 = smul.addr %s307, 64
          %s309 = scalar_lea.vmem [#allocation8], %s308
          %310 = dma.done %s306, 1024
        $region52: #{tpu_custom_call.1} parent=47 // pred_fallthru
          _
      $region48: #{tpu_custom_call.1} parent=5 // pred_fallthru
        _
    $region6: #{tpu_custom_call.1} parent=1 // loop_footer
      %s23 = sadd.s32 1, %s19
    $region7: #{tpu_custom_call.1} parent=1 // loop_footer_branch
      %18 = sbr.rel target = $region3
    $region8: #{tpu_custom_call.1} parent=1 // loop_exit
      _
    %311 = vsyncpa [#allocation4], 1
    %s312 = scalar_lea.sflag [#allocation4], 1
    %313 = vsyncpa %s312, 1
    %314 = vsyncpa [#allocation7], 1
    %s315 = scalar_lea.sflag [#allocation7], 1
    %316 = vsyncpa %s315, 1
    %317 = vsyncpa [#allocation5], 1
    %s318 = scalar_lea.sflag [#allocation5], 1
    %319 = vsyncpa %s318, 1

</llo_original>
